<compile_context>
chip_gen: v5e
topology: v5e:2x2
jax: 0.10.0
libtpu: 0.0.40
codegen_flags: <defaults>
</compile_context>

<pallas_src>
import jax
import jax.numpy as jnp
from jax.experimental import pallas as pl
from jax.experimental.pallas import tpu as pltpu


def _alpha_kernel(p_ref, o_ref):
    # Identity pass-through of 3 scalars via SMEM (scalar element copies).
    # With input_output_aliases the output HBM buffer is the input buffer,
    # so this is an in-place no-op copy.
    for i in range(3):
        o_ref[i] = p_ref[i]


@jax.jit
def _alpha_forward_kernel(logalpha, logalphaA, logalphaB):
    packed = jnp.concatenate([logalpha, logalphaA, logalphaB]).astype(jnp.float32)
    out = pl.pallas_call(
        _alpha_kernel,
        out_shape=jax.ShapeDtypeStruct((3,), jnp.float32),
        in_specs=[pl.BlockSpec(memory_space=pltpu.SMEM)],
        out_specs=pl.BlockSpec(memory_space=pltpu.SMEM),
        input_output_aliases={0: 0},  # alias output to packed input: no extra buffer
        cost_estimate=pl.CostEstimate(flops=0, transcendentals=0, bytes_accessed=24),
    )(packed)
    return out[0:1], out[1:2], out[2:3]


def alpha_forward(logalpha, logalphaA, logalphaB, *, use_kernel=True):
    """Pallas equivalent of Alpha.forward(): returns the three parameters.

    use_kernel=False is the recommended production path (the fastest kernel
    is no kernel: forward() is a pure parameter pass-through and XLA will
    elide it).  use_kernel=True routes the scalars through a minimal,
    aliased SMEM pallas_call so a Pallas module boundary exists.
    """
    if not use_kernel:
        return (logalpha, logalphaA, logalphaB)
    return _alpha_forward_kernel(logalpha, logalphaA, logalphaB)


def init_alpha_params(key):
    """Deterministic stand-in for nn.Parameter(0.01 * torch.randn(1))."""
    k1, k2, k3 = jax.random.split(key, 3)
    logalpha = 0.01 * jax.random.normal(k1, (1,), dtype=jnp.float32)
    logalphaA = 0.01 * jax.random.normal(k2, (1,), dtype=jnp.float32)
    logalphaB = 0.01 * jax.random.normal(k3, (1,), dtype=jnp.float32)
    return logalpha, logalphaA, logalphaB


if __name__ == "__main__":
    key = jax.random.PRNGKey(0)
    logalpha, logalphaA, logalphaB = init_alpha_params(key)

    # Kernel path (module boundary).
    out = alpha_forward(logalpha, logalphaA, logalphaB, use_kernel=True)
    out = jax.block_until_ready(out)

    # Zero-overhead path (what a real training step should use).
    direct = alpha_forward(logalpha, logalphaA, logalphaB, use_kernel=False)

    # Correctness: exact identity pass-through of the parameters.
    assert out[0].shape == (1,) and out[0].dtype == jnp.float32
    assert out[1].shape == (1,) and out[2].shape == (1,)
    assert jnp.allclose(out[0], logalpha)
    assert jnp.allclose(out[1], logalphaA)
    assert jnp.allclose(out[2], logalphaB)
    assert jnp.allclose(direct[0], logalpha)
    assert jnp.allclose(direct[1], logalphaA)
    assert jnp.allclose(direct[2], logalphaB)

    print("KERNEL_OK")
</pallas_src>

<mosaic_0001>
module attributes {stable_mosaic.version = 11 : i64} {
  func.func @_alpha_kernel(%arg0: memref<3xf32, #tpu.memory_space<smem>>, %arg1: memref<3xf32, #tpu.memory_space<smem>>) attributes {dimension_semantics = [], scalar_prefetch = 0 : i64, scratch_operands = 0 : i64, tpu.core_type = #tpu.core_type<tc>} {
    %c0 = arith.constant 0 : index
    %0 = memref.load %arg0[%c0] : memref<3xf32, #tpu.memory_space<smem>>
    %c0_0 = arith.constant 0 : index
    %1 = memref.load %arg1[%c0_0] : memref<3xf32, #tpu.memory_space<smem>>
    memref.store %0, %arg1[%c0_0] : memref<3xf32, #tpu.memory_space<smem>>
    %c1 = arith.constant 1 : index
    %2 = memref.load %arg0[%c1] : memref<3xf32, #tpu.memory_space<smem>>
    %c1_1 = arith.constant 1 : index
    %3 = memref.load %arg1[%c1_1] : memref<3xf32, #tpu.memory_space<smem>>
    memref.store %2, %arg1[%c1_1] : memref<3xf32, #tpu.memory_space<smem>>
    %c2 = arith.constant 2 : index
    %4 = memref.load %arg0[%c2] : memref<3xf32, #tpu.memory_space<smem>>
    %c2_2 = arith.constant 2 : index
    %5 = memref.load %arg1[%c2_2] : memref<3xf32, #tpu.memory_space<smem>>
    memref.store %4, %arg1[%c2_2] : memref<3xf32, #tpu.memory_space<smem>>
    return
  }
}

</mosaic_0001>

<llo_original>
// kernel: _alpha_forward_kernel.1
$region0: #{_alpha_forward_kernel.1}
  #allocation0 [shape = 'u32[]', space=smem, size = 0x4, offset = 0x4, fixed_abs, tag = 'smem constant byte address 0x4 - core index']
  #allocation1 [shape = 'u32[72,128]{1,0:T(1,128)}', space=vmem, size = 0x9000, scoped, tag = 'internal scratch']
  %s0 = inlined_call_operand.vmem [shape: f32[3], index: 0, kind: input, shape index: {}, may-alias: {0,1}]
  %s1 = inlined_call_operand.vmem [shape: f32[3], index: 1, kind: output, shape index: {}, may-alias: {0,1}]
  %s2 = sld [smem:[#allocation0]]
  $region18: #{_alpha_forward_kernel.1} parent=0
    _
  %s4 = ssub.s32 1, %s2
  %s5 = scalar_select 0, %s4, %s2
  $region1: #{_alpha_forward_kernel.1} parent=0
    #allocation2 [shape = 'u8[512]{0}', space=smem, size = 0x200, scoped, tag = 'input window, operand 0, single buffered']
    #allocation3 [shape = 's32[1]{0}', space=sflag, size = 0x4, scoped, tag = 'scoped memory for _alpha_forward_kernel.1']
    #allocation4 [shape = 's32[1]{0}', space=sflag, size = 0x4, scoped, tag = 'scoped memory for _alpha_forward_kernel.1']
    #allocation5 [shape = 'u8[512]{0}', space=smem, size = 0x200, scoped, tag = 'output window, operand 0, single buffered']
    %6 = vsyncpa [#allocation3], 0
    %7 = vsyncpa [#allocation4], 0
    // Predicated region
    $region2: #{_alpha_forward_kernel.1} parent=1 // pred_check
      _
    $region3: #{_alpha_forward_kernel.1} parent=1 // pred_check_branch
      %9 = sbr.rel (0) target = $region5
    $region4: #{_alpha_forward_kernel.1} parent=1 // pred_region
      %11 = vsyncadd [#allocation3], 0
      %s13 = sshll.u32 %s0, 4
      %s14 = int_to_ptr.vmem [resolvable:$true] %s13
      %16 = dma.vmem_to_smem %s14, 16, [#allocation2], [#allocation3]
    $region5: #{_alpha_forward_kernel.1} parent=1 // pred_fallthru
      _
    // Predicated region
    $region6: #{_alpha_forward_kernel.1} parent=1 // pred_check
      _
    $region7: #{_alpha_forward_kernel.1} parent=1 // pred_check_branch
      %18 = sbr.rel (0) target = $region9
    $region8: #{_alpha_forward_kernel.1} parent=1 // pred_region
      %20 = dma.done [#allocation3], 16
    $region9: #{_alpha_forward_kernel.1} parent=1 // pred_fallthru
      _
    %21 = sfence
    %s22 = sld [smem:[#allocation2]]
    %s23 = scalar_lea.smem [#allocation5], 0
    %24 = sst [smem:[%s23]] %s22
    %s25 = sld [smem:[#allocation2 + $0x1]]
    %s26 = scalar_lea.smem [#allocation5], 1
    %27 = sst [smem:[%s26]] %s25
    %s28 = sld [smem:[#allocation2 + $0x2]]
    %s29 = scalar_lea.smem [#allocation5], 2
    %30 = sst [smem:[%s29]] %s28
    // Predicated region
    $region10: #{_alpha_forward_kernel.1} parent=1 // pred_check
      _
    $region11: #{_alpha_forward_kernel.1} parent=1 // pred_check_branch
      %32 = sbr.rel (0) target = $region13
    $region12: #{_alpha_forward_kernel.1} parent=1 // pred_region
      %34 = vsyncadd [#allocation4], 0
      %s36 = sshll.u32 %s1, 4
      %s37 = int_to_ptr.vmem [resolvable:$true] %s36
      %39 = dma.smem_to_vmem [#allocation5], 16, %s37, [#allocation4]
    $region13: #{_alpha_forward_kernel.1} parent=1 // pred_fallthru
      _
    // Predicated region
    $region14: #{_alpha_forward_kernel.1} parent=1 // pred_check
      _
    $region15: #{_alpha_forward_kernel.1} parent=1 // pred_check_branch
      %41 = sbr.rel (0) target = $region17
    $region16: #{_alpha_forward_kernel.1} parent=1 // pred_region
      %43 = dma.done [#allocation4], 16
    $region17: #{_alpha_forward_kernel.1} parent=1 // pred_fallthru
      _
    %44 = sfence
    %45 = vsyncpa [#allocation3], 1
    %46 = vsyncpa [#allocation4], 1

</llo_original>
